<compile_context>
chip_gen: v7x
topology: tpu7x:2x2x1
jax: 0.10.0
libtpu: 0.0.40
codegen_flags: <defaults>
</compile_context>

<pallas_src>
import functools

import jax
import jax.numpy as jnp
from jax import lax
from jax.experimental import pallas as pl
from jax.experimental.pallas import tpu as pltpu

_SUB, _LANE = 8, 128


def _round_up(x, m):
    return (x + m - 1) // m * m


# ----------------------------------------------------------------------------
# Fused encoder kernel: embedding lookup + input projection + serial tanh-RNN
# recurrence + MLP head, in ONE gridless invocation.
# ----------------------------------------------------------------------------
def _encoder_kernel(ids_ref, emb_ref, wih_ref, whh_ref, b_ref,
                    w0_ref, b0_ref, w1_ref, b1_ref,
                    out_ref, hid_ref, *, seq_len, batch_pad):
    SB = seq_len * batch_pad
    V = emb_ref.shape[0]
    H = whh_ref.shape[0]

    # ---- fused embedding lookup as a one-hot MXU matmul ---------------------
    # Removes the wrapper-side XLA gather launch and the HBM round trip of the
    # embedded activations.  For a large vocabulary this would switch to a
    # scalar-prefetch + DMA-gather scheme instead of a one-hot matmul.
    ids = ids_ref[...]                                                # (SB, 1) int32
    onehot = (lax.broadcasted_iota(jnp.int32, (SB, V), 1) == ids).astype(jnp.float32)
    x = jnp.dot(onehot, emb_ref[...], preferred_element_type=jnp.float32)   # (SB, E)
    # TODO(synk): nn.Dropout(0.2) is identity in eval mode; a training-mode path
    # would mask here with pltpu.prng_seed / pltpu.prng_random_bits.

    # ---- time-parallel input projection: one (SB, E) x (E, H) GEMM ----------
    pre = jnp.dot(x, wih_ref[...], preferred_element_type=jnp.float32) + b_ref[...]  # (SB, H)

    w_hh = whh_ref[...]                                               # (H, H)

    # ---- serial recurrence ---------------------------------------------------
    # Hidden states are collected time-major in registers and written with a
    # single contiguous lane-dense store (out_ref is (SB, H_pad) time-major).
    # For large S: lax.fori_loop carrying h, per-step tile-aligned writes via
    # out_ref[pl.ds(t * batch_pad, batch_pad), :], and an S-chunk grid axis.
    h = jnp.zeros((batch_pad, H), jnp.float32)
    states = []
    for t in range(seq_len):
        h = jnp.tanh(pre[t * batch_pad:(t + 1) * batch_pad]
                     + jnp.dot(h, w_hh, preferred_element_type=jnp.float32))
        states.append(h)
    out_ref[...] = jnp.concatenate(states, axis=0).astype(out_ref.dtype)    # (SB, H)

    # ---- fused MLP head on the final hidden state ----------------------------
    z = jnp.dot(h, w0_ref[...], preferred_element_type=jnp.float32) + b0_ref[...]
    z = jnp.maximum(z, 0.0)
    y = jnp.dot(z, w1_ref[...], preferred_element_type=jnp.float32) + b1_ref[...]
    hid_ref[...] = jnp.tanh(y).astype(hid_ref.dtype)


def encoder_core(ids_tm, emb_p, wih_p, whh_p, b_p, w0_p, b0_p, w1_p, b1_p,
                 *, seq_len, batch_pad):
    """All operands padded to (8,128)-tile-aligned shapes.
    Returns (out_tm (S*B_pad, H_pad) time-major, hid (B_pad, D_pad))."""
    SB = ids_tm.shape[0]
    V_p, E_p = emb_p.shape
    H_p = whh_p.shape[0]
    D_p = w1_p.shape[1]

    flops = (2 * SB * V_p * E_p                       # one-hot embedding matmul
             + 2 * SB * E_p * H_p                     # input projection
             + 2 * seq_len * batch_pad * H_p * H_p    # recurrence
             + 2 * batch_pad * H_p * H_p              # linear0
             + 2 * batch_pad * H_p * D_p)             # linear1
    transcendentals = SB * H_p + batch_pad * D_p
    bytes_accessed = 4 * (SB + V_p * E_p + E_p * H_p + H_p * H_p + H_p
                          + H_p * H_p + H_p + H_p * D_p + D_p
                          + SB * H_p + batch_pad * D_p)

    vmem = pl.BlockSpec(memory_space=pltpu.MemorySpace.VMEM)
    kernel = functools.partial(_encoder_kernel, seq_len=seq_len, batch_pad=batch_pad)
    out_tm, hid = pl.pallas_call(
        kernel,
        out_shape=(
            jax.ShapeDtypeStruct((SB, H_p), jnp.float32),          # time-major RNN outputs
            jax.ShapeDtypeStruct((batch_pad, D_p), jnp.float32),   # MLP-head hidden
        ),
        in_specs=[vmem] * 9,
        out_specs=(vmem, vmem),
        cost_estimate=pl.CostEstimate(flops=flops,
                                      transcendentals=transcendentals,
                                      bytes_accessed=bytes_accessed),
        # Gridless: everything is a full VMEM block at these sizes.  At real
        # (B, S, H) on v7x this gains a 'parallel' batch axis (2 TCs/chip) and
        # an 'arbitrary' S-chunk axis sized against the 64 MiB VMEM, with
        # pltpu.CompilerParams(vmem_limit_bytes=...) set explicitly.
    )(ids_tm, emb_p, wih_p, whh_p, b_p, w0_p, b0_p, w1_p, b1_p)
    return out_tm, hid


# ----------------------------------------------------------------------------
# Parameters: logical (PyTorch-like) init + one-time tile-aligned padding
# ----------------------------------------------------------------------------
def init_encoder_params(key, input_size, emb_size, enc_hidden, dec_hidden):
    keys = jax.random.split(key, 8)
    sH = 1.0 / jnp.sqrt(enc_hidden)
    return {
        # nn.Embedding: N(0,1)
        "emb": jax.random.normal(keys[0], (input_size, emb_size), jnp.float32),
        # nn.RNN weights stored pre-transposed for the h = x @ W^T convention
        "w_ih_t": jax.random.uniform(keys[1], (emb_size, enc_hidden), jnp.float32, -sH, sH),
        "w_hh_t": jax.random.uniform(keys[2], (enc_hidden, enc_hidden), jnp.float32, -sH, sH),
        "b_rnn": (
            jax.random.uniform(keys[3], (1, enc_hidden), jnp.float32, -sH, sH)
            + jax.random.uniform(keys[4], (1, enc_hidden), jnp.float32, -sH, sH)
        ),  # b_ih + b_hh (always added together)
        "w0_t": jax.random.uniform(keys[5], (enc_hidden, enc_hidden), jnp.float32, -sH, sH),
        "b0": jnp.zeros((1, enc_hidden), jnp.float32),
        "w1_t": jax.random.uniform(keys[6], (enc_hidden, dec_hidden), jnp.float32, -sH, sH),
        "b1": jnp.zeros((1, dec_hidden), jnp.float32),
    }


def _pad2(a, rows, cols):
    return jnp.pad(a, ((0, rows - a.shape[0]), (0, cols - a.shape[1])))


def prepare_encoder_params(params):
    """One-time zero-padding of all kernel operands to (8,128)-aligned shapes.
    Zero padding is exactly neutral for the forward math."""
    V, E = params["emb"].shape
    H = params["w_hh_t"].shape[0]
    D = params["w1_t"].shape[1]
    V_p, E_p = _round_up(V, _LANE), _round_up(E, _LANE)
    H_p, D_p = _round_up(H, _LANE), _round_up(D, _LANE)
    return {
        "emb": _pad2(params["emb"], V_p, E_p),
        "w_ih_t": _pad2(params["w_ih_t"], E_p, H_p),
        "w_hh_t": _pad2(params["w_hh_t"], H_p, H_p),
        "b_rnn": _pad2(params["b_rnn"], 1, H_p),
        "w0_t": _pad2(params["w0_t"], H_p, H_p),
        "b0": _pad2(params["b0"], 1, H_p),
        "w1_t": _pad2(params["w1_t"], H_p, D_p),
        "b1": _pad2(params["b1"], 1, D_p),
    }


# ----------------------------------------------------------------------------
# Forward wrapper
# ----------------------------------------------------------------------------
@functools.partial(jax.jit, static_argnames=("h_enc", "h_dec"))
def encoder_forward(padded_params, token_ids, *, h_enc, h_dec):
    """token_ids: (B, S) int32.  Returns (output (B,S,H_enc), hidden (1,B,H_dec))."""
    B, S = token_ids.shape
    B_pad = _round_up(max(B, _SUB), _SUB)
    H_pad = padded_params["w_hh_t"].shape[0]

    # Only the tiny int32 id matrix is padded/transposed; the embedding lookup
    # itself happens inside the kernel.  Time-major row layout: t*B_pad + b.
    ids = jnp.pad(token_ids, ((0, B_pad - B), (0, 0)))       # (B_pad, S)
    ids_tm = ids.T.reshape(S * B_pad, 1)                     # (S*B_pad, 1)

    out_tm, hid = encoder_core(
        ids_tm, padded_params["emb"], padded_params["w_ih_t"],
        padded_params["w_hh_t"], padded_params["b_rnn"],
        padded_params["w0_t"], padded_params["b0"],
        padded_params["w1_t"], padded_params["b1"],
        seq_len=S, batch_pad=B_pad,
    )
    # Single cheap wrapper-side relayout / un-pad of the time-major kernel output.
    output = out_tm.reshape(S, B_pad, H_pad)[:, :B, :h_enc].transpose(1, 0, 2)
    hidden = hid[:B, :h_dec][None]                            # (1, B, H_dec) like PyTorch
    return output, hidden


# ----------------------------------------------------------------------------
# Pure-JAX reference (for correctness check), uses the unpadded params
# ----------------------------------------------------------------------------
def encoder_reference(params, token_ids):
    emb = jnp.take(params["emb"], token_ids, axis=0)
    x_tbe = jnp.transpose(emb, (1, 0, 2))
    B = token_ids.shape[0]
    H = params["w_hh_t"].shape[0]

    def step(h, x):
        h_new = jnp.tanh(x @ params["w_ih_t"] + h @ params["w_hh_t"] + params["b_rnn"])
        return h_new, h_new

    h0 = jnp.zeros((B, H), jnp.float32)
    h_last, outs = lax.scan(step, h0, x_tbe)
    output = jnp.transpose(outs, (1, 0, 2))
    z = jnp.maximum(h_last @ params["w0_t"] + params["b0"], 0.0)
    hidden = jnp.tanh(z @ params["w1_t"] + params["b1"])[None]
    return output, hidden


if __name__ == "__main__":
    # Small shapes consistent with the module's forward: input (batch, seq_len) of ids.
    B, S = 2, 8
    INPUT_SIZE, EMB, H_ENC, H_DEC = 50, 32, 32, 32

    key = jax.random.PRNGKey(0)
    pkey, ikey = jax.random.split(key)
    params = init_encoder_params(pkey, INPUT_SIZE, EMB, H_ENC, H_DEC)
    padded_params = jax.tree_util.tree_map(jax.device_put, prepare_encoder_params(params))
    token_ids = jax.random.randint(ikey, (B, S), 0, INPUT_SIZE, dtype=jnp.int32)

    output, hidden = encoder_forward(padded_params, token_ids, h_enc=H_ENC, h_dec=H_DEC)
    jax.block_until_ready((output, hidden))

    ref_out, ref_hidden = encoder_reference(params, token_ids)
    assert output.shape == (B, S, H_ENC) and hidden.shape == (1, B, H_DEC)
    assert jnp.allclose(output, ref_out, atol=1e-4, rtol=1e-4)
    assert jnp.allclose(hidden, ref_hidden, atol=1e-4, rtol=1e-4)

    print("KERNEL_OK")
</pallas_src>

<mosaic_0001>
module attributes {stable_mosaic.version = 11 : i64} {
  func.func @_encoder_kernel(%arg0: memref<64x1xi32, #tpu.memory_space<vmem>>, %arg1: memref<128x128xf32, #tpu.memory_space<vmem>>, %arg2: memref<128x128xf32, #tpu.memory_space<vmem>>, %arg3: memref<128x128xf32, #tpu.memory_space<vmem>>, %arg4: memref<1x128xf32, #tpu.memory_space<vmem>>, %arg5: memref<128x128xf32, #tpu.memory_space<vmem>>, %arg6: memref<1x128xf32, #tpu.memory_space<vmem>>, %arg7: memref<128x128xf32, #tpu.memory_space<vmem>>, %arg8: memref<1x128xf32, #tpu.memory_space<vmem>>, %arg9: memref<64x128xf32, #tpu.memory_space<vmem>>, %arg10: memref<8x128xf32, #tpu.memory_space<vmem>>) attributes {dimension_semantics = [], scalar_prefetch = 0 : i64, scratch_operands = 0 : i64, tpu.core_type = #tpu.core_type<tc>} {
    %c0 = arith.constant 0 : index
    %c0_0 = arith.constant 0 : index
    %0 = vector.load %arg0[%c0, %c0_0] : memref<64x1xi32, #tpu.memory_space<vmem>>, vector<64x1xi32>
    %1 = tpu.iota {dimensions = array<i32: 1>} : vector<64x128xi32>
    %2 = vector.broadcast %0 : vector<64x1xi32> to vector<64x128xi32>
    %3 = arith.cmpi eq, %1, %2 : vector<64x128xi32>
    %4 = arith.extui %3 : vector<64x128xi1> to vector<64x128xi32>
    %5 = arith.sitofp %4 : vector<64x128xi32> to vector<64x128xf32>
    %c0_1 = arith.constant 0 : index
    %c0_2 = arith.constant 0 : index
    %6 = vector.load %arg1[%c0_1, %c0_2] : memref<128x128xf32, #tpu.memory_space<vmem>>, vector<128x128xf32>
    %cst = arith.constant dense<0.000000e+00> : vector<64x128xf32>
    %7 = tpu.matmul %5, %6, %cst {dimension_numbers = #tpu.dot_dimension_numbers<[1], [0], [0], [1], [0, 0, 1, 1], [], []>} : vector<64x128xf32>, vector<128x128xf32>, vector<64x128xf32> -> vector<64x128xf32>
    %c0_3 = arith.constant 0 : index
    %c0_4 = arith.constant 0 : index
    %8 = vector.load %arg2[%c0_3, %c0_4] : memref<128x128xf32, #tpu.memory_space<vmem>>, vector<128x128xf32>
    %cst_5 = arith.constant dense<0.000000e+00> : vector<64x128xf32>
    %9 = tpu.matmul %7, %8, %cst_5 {dimension_numbers = #tpu.dot_dimension_numbers<[1], [0], [0], [1], [0, 0, 1, 1], [], []>} : vector<64x128xf32>, vector<128x128xf32>, vector<64x128xf32> -> vector<64x128xf32>
    %c0_6 = arith.constant 0 : index
    %c0_7 = arith.constant 0 : index
    %10 = vector.load %arg4[%c0_6, %c0_7] : memref<1x128xf32, #tpu.memory_space<vmem>>, vector<1x128xf32>
    %11 = vector.broadcast %10 : vector<1x128xf32> to vector<64x128xf32>
    %12 = arith.addf %9, %11 : vector<64x128xf32>
    %c0_8 = arith.constant 0 : index
    %c0_9 = arith.constant 0 : index
    %13 = vector.load %arg3[%c0_8, %c0_9] : memref<128x128xf32, #tpu.memory_space<vmem>>, vector<128x128xf32>
    %cst_10 = arith.constant 0.000000e+00 : f32
    %14 = vector.broadcast %cst_10 : f32 to vector<8x128xf32>
    %15 = vector.extract_strided_slice %12 {offsets = [0, 0], sizes = [8, 128], strides = [1, 1]} : vector<64x128xf32> to vector<8x128xf32>
    %cst_11 = arith.constant dense<0.000000e+00> : vector<8x128xf32>
    %16 = tpu.matmul %14, %13, %cst_11 {dimension_numbers = #tpu.dot_dimension_numbers<[1], [0], [0], [1], [0, 0, 1, 1], [], []>} : vector<8x128xf32>, vector<128x128xf32>, vector<8x128xf32> -> vector<8x128xf32>
    %17 = arith.addf %15, %16 : vector<8x128xf32>
    %18 = math.tanh %17 : vector<8x128xf32>
    %19 = vector.extract_strided_slice %12 {offsets = [8, 0], sizes = [8, 128], strides = [1, 1]} : vector<64x128xf32> to vector<8x128xf32>
    %cst_12 = arith.constant dense<0.000000e+00> : vector<8x128xf32>
    %20 = tpu.matmul %18, %13, %cst_12 {dimension_numbers = #tpu.dot_dimension_numbers<[1], [0], [0], [1], [0, 0, 1, 1], [], []>} : vector<8x128xf32>, vector<128x128xf32>, vector<8x128xf32> -> vector<8x128xf32>
    %21 = arith.addf %19, %20 : vector<8x128xf32>
    %22 = math.tanh %21 : vector<8x128xf32>
    %23 = vector.extract_strided_slice %12 {offsets = [16, 0], sizes = [8, 128], strides = [1, 1]} : vector<64x128xf32> to vector<8x128xf32>
    %cst_13 = arith.constant dense<0.000000e+00> : vector<8x128xf32>
    %24 = tpu.matmul %22, %13, %cst_13 {dimension_numbers = #tpu.dot_dimension_numbers<[1], [0], [0], [1], [0, 0, 1, 1], [], []>} : vector<8x128xf32>, vector<128x128xf32>, vector<8x128xf32> -> vector<8x128xf32>
    %25 = arith.addf %23, %24 : vector<8x128xf32>
    %26 = math.tanh %25 : vector<8x128xf32>
    %27 = vector.extract_strided_slice %12 {offsets = [24, 0], sizes = [8, 128], strides = [1, 1]} : vector<64x128xf32> to vector<8x128xf32>
    %cst_14 = arith.constant dense<0.000000e+00> : vector<8x128xf32>
    %28 = tpu.matmul %26, %13, %cst_14 {dimension_numbers = #tpu.dot_dimension_numbers<[1], [0], [0], [1], [0, 0, 1, 1], [], []>} : vector<8x128xf32>, vector<128x128xf32>, vector<8x128xf32> -> vector<8x128xf32>
    %29 = arith.addf %27, %28 : vector<8x128xf32>
    %30 = math.tanh %29 : vector<8x128xf32>
    %31 = vector.extract_strided_slice %12 {offsets = [32, 0], sizes = [8, 128], strides = [1, 1]} : vector<64x128xf32> to vector<8x128xf32>
    %cst_15 = arith.constant dense<0.000000e+00> : vector<8x128xf32>
    %32 = tpu.matmul %30, %13, %cst_15 {dimension_numbers = #tpu.dot_dimension_numbers<[1], [0], [0], [1], [0, 0, 1, 1], [], []>} : vector<8x128xf32>, vector<128x128xf32>, vector<8x128xf32> -> vector<8x128xf32>
    %33 = arith.addf %31, %32 : vector<8x128xf32>
    %34 = math.tanh %33 : vector<8x128xf32>
    %35 = vector.extract_strided_slice %12 {offsets = [40, 0], sizes = [8, 128], strides = [1, 1]} : vector<64x128xf32> to vector<8x128xf32>
    %cst_16 = arith.constant dense<0.000000e+00> : vector<8x128xf32>
    %36 = tpu.matmul %34, %13, %cst_16 {dimension_numbers = #tpu.dot_dimension_numbers<[1], [0], [0], [1], [0, 0, 1, 1], [], []>} : vector<8x128xf32>, vector<128x128xf32>, vector<8x128xf32> -> vector<8x128xf32>
    %37 = arith.addf %35, %36 : vector<8x128xf32>
    %38 = math.tanh %37 : vector<8x128xf32>
    %39 = vector.extract_strided_slice %12 {offsets = [48, 0], sizes = [8, 128], strides = [1, 1]} : vector<64x128xf32> to vector<8x128xf32>
    %cst_17 = arith.constant dense<0.000000e+00> : vector<8x128xf32>
    %40 = tpu.matmul %38, %13, %cst_17 {dimension_numbers = #tpu.dot_dimension_numbers<[1], [0], [0], [1], [0, 0, 1, 1], [], []>} : vector<8x128xf32>, vector<128x128xf32>, vector<8x128xf32> -> vector<8x128xf32>
    %41 = arith.addf %39, %40 : vector<8x128xf32>
    %42 = math.tanh %41 : vector<8x128xf32>
    %43 = vector.extract_strided_slice %12 {offsets = [56, 0], sizes = [8, 128], strides = [1, 1]} : vector<64x128xf32> to vector<8x128xf32>
    %cst_18 = arith.constant dense<0.000000e+00> : vector<8x128xf32>
    %44 = tpu.matmul %42, %13, %cst_18 {dimension_numbers = #tpu.dot_dimension_numbers<[1], [0], [0], [1], [0, 0, 1, 1], [], []>} : vector<8x128xf32>, vector<128x128xf32>, vector<8x128xf32> -> vector<8x128xf32>
    %45 = arith.addf %43, %44 : vector<8x128xf32>
    %46 = math.tanh %45 : vector<8x128xf32>
    %47 = tpu.concatenate %18, %22, %26, %30, %34, %38, %42, %46 in 0 : vector<8x128xf32>, vector<8x128xf32>, vector<8x128xf32>, vector<8x128xf32>, vector<8x128xf32>, vector<8x128xf32>, vector<8x128xf32>, vector<8x128xf32> -> vector<64x128xf32>
    %c0_19 = arith.constant 0 : index
    %c0_20 = arith.constant 0 : index
    %48 = vector.load %arg9[%c0_19, %c0_20] : memref<64x128xf32, #tpu.memory_space<vmem>>, vector<64x128xf32>
    tpu.vector_store %arg9[%c0_19, %c0_20], %47 {strides = array<i32>} : memref<64x128xf32, #tpu.memory_space<vmem>>, vector<64x128xf32>,
    %c0_21 = arith.constant 0 : index
    %c0_22 = arith.constant 0 : index
    %49 = vector.load %arg5[%c0_21, %c0_22] : memref<128x128xf32, #tpu.memory_space<vmem>>, vector<128x128xf32>
    %cst_23 = arith.constant dense<0.000000e+00> : vector<8x128xf32>
    %50 = tpu.matmul %46, %49, %cst_23 {dimension_numbers = #tpu.dot_dimension_numbers<[1], [0], [0], [1], [0, 0, 1, 1], [], []>} : vector<8x128xf32>, vector<128x128xf32>, vector<8x128xf32> -> vector<8x128xf32>
    %c0_24 = arith.constant 0 : index
    %c0_25 = arith.constant 0 : index
    %51 = vector.load %arg6[%c0_24, %c0_25] : memref<1x128xf32, #tpu.memory_space<vmem>>, vector<1x128xf32>
    %52 = vector.broadcast %51 : vector<1x128xf32> to vector<8x128xf32>
    %53 = arith.addf %50, %52 : vector<8x128xf32>
    %cst_26 = arith.constant 0.000000e+00 : f32
    %54 = vector.broadcast %cst_26 : f32 to vector<8x128xf32>
    %55 = arith.maximumf %53, %54 : vector<8x128xf32>
    %c0_27 = arith.constant 0 : index
    %c0_28 = arith.constant 0 : index
    %56 = vector.load %arg7[%c0_27, %c0_28] : memref<128x128xf32, #tpu.memory_space<vmem>>, vector<128x128xf32>
    %cst_29 = arith.constant dense<0.000000e+00> : vector<8x128xf32>
    %57 = tpu.matmul %55, %56, %cst_29 {dimension_numbers = #tpu.dot_dimension_numbers<[1], [0], [0], [1], [0, 0, 1, 1], [], []>} : vector<8x128xf32>, vector<128x128xf32>, vector<8x128xf32> -> vector<8x128xf32>
    %c0_30 = arith.constant 0 : index
    %c0_31 = arith.constant 0 : index
    %58 = vector.load %arg8[%c0_30, %c0_31] : memref<1x128xf32, #tpu.memory_space<vmem>>, vector<1x128xf32>
    %59 = vector.broadcast %58 : vector<1x128xf32> to vector<8x128xf32>
    %60 = arith.addf %57, %59 : vector<8x128xf32>
    %61 = math.tanh %60 : vector<8x128xf32>
    %c0_32 = arith.constant 0 : index
    %c0_33 = arith.constant 0 : index
    %62 = vector.load %arg10[%c0_32, %c0_33] : memref<8x128xf32, #tpu.memory_space<vmem>>, vector<8x128xf32>
    tpu.vector_store %arg10[%c0_32, %c0_33], %61 {strides = array<i32>} : memref<8x128xf32, #tpu.memory_space<vmem>>, vector<8x128xf32>,
    return
  }
}

</mosaic_0001>

<llo_original>
// kernel: encoder_forward.1
$region0: #{encoder_forward.1}
  #allocation0 [shape = 'u32[]', space=smem, size = 0x4, offset = 0x4, fixed_abs, tag = 'smem constant byte address 0x4 - core index']
  #allocation1 [shape = 'u32[144,128]{1,0:T(1,128)}', space=vmem, size = 0x12000, scoped, tag = 'internal scratch']
  %s0 = inlined_call_operand.vmem [shape: s32[64,1], index: 0, kind: input, shape index: {}]
  %s1 = inlined_call_operand.hbm [shape: f32[128,128], index: 1, kind: input, shape index: {}]
  %s2 = inlined_call_operand.hbm [shape: f32[128,128], index: 2, kind: input, shape index: {}]
  %s3 = inlined_call_operand.hbm [shape: f32[128,128], index: 3, kind: input, shape index: {}]
  %s4 = inlined_call_operand.vmem [shape: f32[1,128], index: 4, kind: input, shape index: {}]
  %s5 = inlined_call_operand.hbm [shape: f32[128,128], index: 5, kind: input, shape index: {}]
  %s6 = inlined_call_operand.vmem [shape: f32[1,128], index: 6, kind: input, shape index: {}]
  %s7 = inlined_call_operand.hbm [shape: f32[128,128], index: 7, kind: input, shape index: {}]
  %s8 = inlined_call_operand.vmem [shape: f32[1,128], index: 8, kind: input, shape index: {}]
  %s9 = inlined_call_operand.vmem [shape: f32[64,128], index: 9, kind: output, shape index: {0}]
  %s10 = inlined_call_operand.vmem [shape: f32[8,128], index: 10, kind: output, shape index: {1}]
  %11 = xla_tuple %s9, %s10
  %s12 = sld [smem:[#allocation0]]
  $region74: #{encoder_forward.1} parent=0
    _
  %s14 = ssub.s32 1, %s12
  %s15 = scalar_select 0, %s14, %s12
  $region1: #{encoder_forward.1} parent=0
    #allocation2 [shape = 'u8[65536]{0}', space=vmem, size = 0x10000, scoped, tag = 'input window, operand 1, single buffered']
    #allocation3 [shape = 's32[1]{0}', space=sflag, size = 0x4, scoped, tag = 'scoped memory for encoder_forward.1']
    #allocation4 [shape = 'u8[65536]{0}', space=vmem, size = 0x10000, scoped, tag = 'input window, operand 2, single buffered']
    #allocation5 [shape = 's32[1]{0}', space=sflag, size = 0x4, scoped, tag = 'scoped memory for encoder_forward.1']
    #allocation6 [shape = 'u8[65536]{0}', space=vmem, size = 0x10000, scoped, tag = 'input window, operand 3, single buffered']
    #allocation7 [shape = 'u8[65536]{0}', space=vmem, size = 0x10000, scoped, tag = 'input window, operand 5, single buffered']
    #allocation8 [shape = 's32[1]{0}', space=sflag, size = 0x4, scoped, tag = 'scoped memory for encoder_forward.1']
    #allocation9 [shape = 'u8[65536]{0}', space=vmem, size = 0x10000, scoped, tag = 'input window, operand 7, single buffered']
    %16 = vsyncpa [#allocation3], 0
    %17 = vsyncpa [#allocation5], 0
    %18 = vsyncpa [#allocation8], 0
    // Predicated region
    $region2: #{encoder_forward.1} parent=1 // pred_check
      _
    $region3: #{encoder_forward.1} parent=1 // pred_check_branch
      %20 = sbr.rel (0) target = $region5
    $region4: #{encoder_forward.1} parent=1 // pred_region
      _
    $region5: #{encoder_forward.1} parent=1 // pred_fallthru
      _
    // Predicated region
    $region6: #{encoder_forward.1} parent=1 // pred_check
      _
    $region7: #{encoder_forward.1} parent=1 // pred_check_branch
      %22 = sbr.rel (0) target = $region9
    $region8: #{encoder_forward.1} parent=1 // pred_region
      %s24 = ssub.s32 2048, 2048
      %25 = vsyncadd [#allocation3], %s24
      %s26 = sshll.u32 [#allocation2], 4
      %s27 = int_to_ptr.vmem [resolvable:$true] %s26
      %32 = dma.hbm_to_vmem [thread:$0]  %s1, 2048, %s27, [#allocation3], 128, 128, 8
    $region9: #{encoder_forward.1} parent=1 // pred_fallthru
      _
    // Predicated region
    $region10: #{encoder_forward.1} parent=1 // pred_check
      _
    $region11: #{encoder_forward.1} parent=1 // pred_check_branch
      %34 = sbr.rel (0) target = $region13
    $region12: #{encoder_forward.1} parent=1 // pred_region
      %s36 = ssub.s32 2048, 2048
      %37 = vsyncadd [#allocation5], %s36
      %s38 = sshll.u32 [#allocation4], 4
      %s39 = int_to_ptr.vmem [resolvable:$true] %s38
      %44 = dma.hbm_to_vmem [thread:$0]  %s2, 2048, %s39, [#allocation5], 128, 128, 8
    $region13: #{encoder_forward.1} parent=1 // pred_fallthru
      _
    // Predicated region
    $region14: #{encoder_forward.1} parent=1 // pred_check
      _
    $region15: #{encoder_forward.1} parent=1 // pred_check_branch
      %46 = sbr.rel (0) target = $region17
    $region16: #{encoder_forward.1} parent=1 // pred_region
      %s48 = ssub.s32 2048, 2048
      %49 = vsyncadd [#allocation5], %s48
      %s50 = sshll.u32 [#allocation6], 4
      %s51 = int_to_ptr.vmem [resolvable:$true] %s50
      %56 = dma.hbm_to_vmem [thread:$0]  %s3, 2048, %s51, [#allocation5], 128, 128, 8
    $region17: #{encoder_forward.1} parent=1 // pred_fallthru
      _
    // Predicated region
    $region18: #{encoder_forward.1} parent=1 // pred_check
      _
    $region19: #{encoder_forward.1} parent=1 // pred_check_branch
      %58 = sbr.rel (0) target = $region21
    $region20: #{encoder_forward.1} parent=1 // pred_region
      _
    $region21: #{encoder_forward.1} parent=1 // pred_fallthru
      _
    // Predicated region
    $region22: #{encoder_forward.1} parent=1 // pred_check
      _
    $region23: #{encoder_forward.1} parent=1 // pred_check_branch
      %60 = sbr.rel (0) target = $region25
    $region24: #{encoder_forward.1} parent=1 // pred_region
      %s62 = ssub.s32 2048, 2048
      %63 = vsyncadd [#allocation8], %s62
      %s64 = sshll.u32 [#allocation7], 4
      %s65 = int_to_ptr.vmem [resolvable:$true] %s64
      %70 = dma.hbm_to_vmem [thread:$0]  %s5, 2048, %s65, [#allocation8], 128, 128, 8
    $region25: #{encoder_forward.1} parent=1 // pred_fallthru
      _
    // Predicated region
    $region26: #{encoder_forward.1} parent=1 // pred_check
      _
    $region27: #{encoder_forward.1} parent=1 // pred_check_branch
      %72 = sbr.rel (0) target = $region29
    $region28: #{encoder_forward.1} parent=1 // pred_region
      _
    $region29: #{encoder_forward.1} parent=1 // pred_fallthru
      _
    // Predicated region
    $region30: #{encoder_forward.1} parent=1 // pred_check
      _
    $region31: #{encoder_forward.1} parent=1 // pred_check_branch
      %74 = sbr.rel (0) target = $region33
    $region32: #{encoder_forward.1} parent=1 // pred_region
      %s76 = ssub.s32 2048, 2048
      %77 = vsyncadd [#allocation8], %s76
      %s78 = sshll.u32 [#allocation9], 4
      %s79 = int_to_ptr.vmem [resolvable:$true] %s78
      %84 = dma.hbm_to_vmem [thread:$0]  %s7, 2048, %s79, [#allocation8], 128, 128, 8
    $region33: #{encoder_forward.1} parent=1 // pred_fallthru
      _
    // Predicated region
    $region34: #{encoder_forward.1} parent=1 // pred_check
      _
    $region35: #{encoder_forward.1} parent=1 // pred_check_branch
      %86 = sbr.rel (0) target = $region37
    $region36: #{encoder_forward.1} parent=1 // pred_region
      _
    $region37: #{encoder_forward.1} parent=1 // pred_fallthru
      _
    // Predicated region
    $region38: #{encoder_forward.1} parent=1 // pred_check
      _
    $region39: #{encoder_forward.1} parent=1 // pred_check_branch
      %88 = sbr.rel (0) target = $region41
    $region40: #{encoder_forward.1} parent=1 // pred_region
      %89 = dma.done [#allocation3], 2048
    $region41: #{encoder_forward.1} parent=1 // pred_fallthru
      _
    // Predicated region
    $region42: #{encoder_forward.1} parent=1 // pred_check
      _
    $region43: #{encoder_forward.1} parent=1 // pred_check_branch
      %91 = sbr.rel (0) target = $region45
    $region44: #{encoder_forward.1} parent=1 // pred_region
      %92 = dma.done [#allocation5], 2048
    $region45: #{encoder_forward.1} parent=1 // pred_fallthru
      _
    // Predicated region
    $region46: #{encoder_forward.1} parent=1 // pred_check
      _
    $region47: #{encoder_forward.1} parent=1 // pred_check_branch
      %94 = sbr.rel (0) target = $region49
    $region48: #{encoder_forward.1} parent=1 // pred_region
      %95 = dma.done [#allocation5], 2048
    $region49: #{encoder_forward.1} parent=1 // pred_fallthru
      _
    // Predicated region
    $region50: #{encoder_forward.1} parent=1 // pred_check
      _
    $region51: #{encoder_forward.1} parent=1 // pred_check_branch
      %97 = sbr.rel (0) target = $region53
    $region52: #{encoder_forward.1} parent=1 // pred_region
      %98 = dma.done [#allocation8], 2048
    $region53: #{encoder_forward.1} parent=1 // pred_fallthru
      _
    // Predicated region
    $region54: #{encoder_forward.1} parent=1 // pred_check
      _
    $region55: #{encoder_forward.1} parent=1 // pred_check_branch
      %100 = sbr.rel (0) target = $region57
    $region56: #{encoder_forward.1} parent=1 // pred_region
      %101 = dma.done [#allocation8], 2048
    $region57: #{encoder_forward.1} parent=1 // pred_fallthru
      _
    %v102 = vld [vmem:[%s0] sm:$0xff]
    %v103 = vld [vmem:[%s0 + $0x8] sm:$0xff]
    %v104 = vld [vmem:[%s0 + $0x10] sm:$0xff]
    %v105 = vld [vmem:[%s0 + $0x18] sm:$0xff]
    %v106 = vld [vmem:[%s0 + $0x20] sm:$0xff]
    %v107 = vld [vmem:[%s0 + $0x28] sm:$0xff]
    %v108 = vld [vmem:[%s0 + $0x30] sm:$0xff]
    %v109 = vld [vmem:[%s0 + $0x38] sm:$0xff]
    %v110 = vlaneseq
    %v111 = vand.u32 %v110, 127
    %112 = vset.pattern.permute.xlu0 0
    %113 = vperm.xlu0 %112, %v102
    %v114 = vpop.permute.xlu0 %113
    %115 = vset.pattern.permute.xlu0 0
    %116 = vperm.xlu0 %115, %v103
    %v117 = vpop.permute.xlu0 %116
    %118 = vset.pattern.permute.xlu0 0
    %119 = vperm.xlu0 %118, %v104
    %v120 = vpop.permute.xlu0 %119
    %121 = vset.pattern.permute.xlu0 0
    %122 = vperm.xlu0 %121, %v105
    %v123 = vpop.permute.xlu0 %122
    %124 = vset.pattern.permute.xlu0 0
    %125 = vperm.xlu0 %124, %v106
    %v126 = vpop.permute.xlu0 %125
    %127 = vset.pattern.permute.xlu0 0
    %128 = vperm.xlu0 %127, %v107
    %v129 = vpop.permute.xlu0 %128
    %130 = vset.pattern.permute.xlu0 0
    %131 = vperm.xlu0 %130, %v108
    %v132 = vpop.permute.xlu0 %131
    %133 = vset.pattern.permute.xlu0 0
    %134 = vperm.xlu0 %133, %v109
    %v135 = vpop.permute.xlu0 %134
    %vm136 = vcmp.eq.s32.totalorder %v111, %v114
    %vm137 = vcmp.eq.s32.totalorder %v111, %v117
    %vm138 = vcmp.eq.s32.totalorder %v111, %v120
    %vm139 = vcmp.eq.s32.totalorder %v111, %v123
    %vm140 = vcmp.eq.s32.totalorder %v111, %v126
    %vm141 = vcmp.eq.s32.totalorder %v111, %v129
    %vm142 = vcmp.eq.s32.totalorder %v111, %v132
    %vm143 = vcmp.eq.s32.totalorder %v111, %v135
    %v144 = vsel %vm136, 1, 0
    %v145 = vsel %vm137, 1, 0
    %v146 = vsel %vm138, 1, 0
    %v147 = vsel %vm139, 1, 0
    %v148 = vsel %vm140, 1, 0
    %v149 = vsel %vm141, 1, 0
    %v150 = vsel %vm142, 1, 0
    %v151 = vsel %vm143, 1, 0
    %v152 = vcvt.s32.f32 %v144
    %v153 = vcvt.s32.f32 %v145
    %v154 = vcvt.s32.f32 %v146
    %v155 = vcvt.s32.f32 %v147
    %v156 = vcvt.s32.f32 %v148
    %v157 = vcvt.s32.f32 %v149
    %v158 = vcvt.s32.f32 %v150
    %v159 = vcvt.s32.f32 %v151
    %v160 = vld [vmem:[#allocation2] sm:$0xff]
    %v161 = vld [vmem:[#allocation2 + $0x8] sm:$0xff]
    %v162 = vld [vmem:[#allocation2 + $0x10] sm:$0xff]
    %v163 = vld [vmem:[#allocation2 + $0x18] sm:$0xff]
    %v164 = vld [vmem:[#allocation2 + $0x20] sm:$0xff]
    %v165 = vld [vmem:[#allocation2 + $0x28] sm:$0xff]
    %v166 = vld [vmem:[#allocation2 + $0x30] sm:$0xff]
    %v167 = vld [vmem:[#allocation2 + $0x38] sm:$0xff]
    %v168 = vld [vmem:[#allocation2 + $0x40] sm:$0xff]
    %v169 = vld [vmem:[#allocation2 + $0x48] sm:$0xff]
    %v170 = vld [vmem:[#allocation2 + $0x50] sm:$0xff]
    %v171 = vld [vmem:[#allocation2 + $0x58] sm:$0xff]
    %v172 = vld [vmem:[#allocation2 + $0x60] sm:$0xff]
    %v173 = vld [vmem:[#allocation2 + $0x68] sm:$0xff]
    %v174 = vld [vmem:[#allocation2 + $0x70] sm:$0xff]
    %v175 = vld [vmem:[#allocation2 + $0x78] sm:$0xff]
    %176 = vmatprep.subr.mxu0 0.0
    %177 = vmatpush1.msra.mxu0 %v160
    %178 = vmatprep.subr.mxu0 0.0
    %179 = vmatpush1.msra.mxu0 %v161
    %180 = vmatprep.subr.mxu0 0.0
    %181 = vmatpush1.msra.mxu0 %v162
    %182 = vmatprep.subr.mxu0 0.0
    %183 = vmatpush1.msra.mxu0 %v163
    %184 = vmatprep.subr.mxu0 0.0
    %185 = vmatpush1.msra.mxu0 %v164
    %186 = vmatprep.subr.mxu0 0.0
    %187 = vmatpush1.msra.mxu0 %v165
    %188 = vmatprep.subr.mxu0 0.0
    %189 = vmatpush1.msra.mxu0 %v166
    %190 = vmatprep.subr.mxu0 0.0
    %191 = vmatpush1.msra.mxu0 %v167
    %192 = vmatprep.subr.mxu0 0.0
    %193 = vmatpush1.msra.mxu0 %v168
    %194 = vmatprep.subr.mxu0 0.0
    %195 = vmatpush1.msra.mxu0 %v169
    %196 = vmatprep.subr.mxu0 0.0
    %197 = vmatpush1.msra.mxu0 %v170
    %198 = vmatprep.subr.mxu0 0.0
    %199 = vmatpush1.msra.mxu0 %v171
    %200 = vmatprep.subr.mxu0 0.0
    %201 = vmatpush1.msra.mxu0 %v172
    %202 = vmatprep.subr.mxu0 0.0
    %203 = vmatpush1.msra.mxu0 %v173
    %204 = vmatprep.subr.mxu0 0.0
    %205 = vmatpush1.msra.mxu0 %v174
    %206 = vmatprep.subr.mxu0 0.0
    %207 = vmatpush1.msra.mxu0 %v175
    %208 = vmatprep.subr.mxu0 0.0
    %209 = vmatpush1.msra.mxu0 0.0
    %210 = vmatprep.subr.mxu0 0.0
    %211 = vmatpush1.msra.mxu0 0.0
    %212 = vmatprep.subr.mxu0 0.0
    %213 = vmatpush1.msra.mxu0 0.0
    %214 = vmatprep.subr.mxu0 0.0
    %215 = vmatpush1.msra.mxu0 0.0
    %216 = vmatprep.subr.mxu0 0.0
    %217 = vmatpush1.msra.mxu0 0.0
    %218 = vmatprep.subr.mxu0 0.0
    %219 = vmatpush1.msra.mxu0 0.0
    %220 = vmatprep.subr.mxu0 0.0
    %221 = vmatpush1.msra.mxu0 0.0
    %222 = vmatprep.subr.mxu0 0.0
    %223 = vmatpush1.msra.mxu0 0.0
    %224 = vmatprep.subr.mxu0 0.0
    %225 = vmatpush1.msra.mxu0 0.0
    %226 = vmatprep.subr.mxu0 0.0
    %227 = vmatpush1.msra.mxu0 0.0
    %228 = vmatprep.subr.mxu0 0.0
    %229 = vmatpush1.msra.mxu0 0.0
    %230 = vmatprep.subr.mxu0 0.0
    %231 = vmatpush1.msra.mxu0 0.0
    %232 = vmatprep.subr.mxu0 0.0
    %233 = vmatpush1.msra.mxu0 0.0
    %234 = vmatprep.subr.mxu0 0.0
    %235 = vmatpush1.msra.mxu0 0.0
    %236 = vmatprep.subr.mxu0 0.0
    %237 = vmatpush1.msra.mxu0 0.0
    %238 = vmatprep.subr.mxu0 0.0
    %239 = vmatpush1.msra.mxu0 0.0
    %240 = vmatprep.mubr.f32.mxu0 0.0
    %241 = vmatmul.mubr.f32.gmra.mrb[0].mxu0 %v152
    %v242 = vpop.f32.mrb[0].mxu0
    %v243 = vadd.f32 0.0, %v242
    %v244 = vpop.f32.mrb[0].mxu0
    %245 = vmatprep.mubr.f32.mxu0 0.0
    %246 = vmatmul.mubr.f32.gmra.mrb[0].mxu0 %v153
    %v247 = vpop.f32.mrb[0].mxu0
    %v248 = vadd.f32 0.0, %v247
    %v249 = vpop.f32.mrb[0].mxu0
    %250 = vmatprep.mubr.f32.mxu0 0.0
    %251 = vmatmul.mubr.f32.gmra.mrb[0].mxu0 %v154
    %v252 = vpop.f32.mrb[0].mxu0
    %v253 = vadd.f32 0.0, %v252
    %v254 = vpop.f32.mrb[0].mxu0
    %255 = vmatprep.mubr.f32.mxu0 0.0
    %256 = vmatmul.mubr.f32.gmra.mrb[0].mxu0 %v155
    %v257 = vpop.f32.mrb[0].mxu0
    %v258 = vadd.f32 0.0, %v257
    %v259 = vpop.f32.mrb[0].mxu0
    %260 = vmatprep.mubr.f32.mxu0 0.0
    %261 = vmatmul.mubr.f32.gmra.mrb[0].mxu0 %v156
    %v262 = vpop.f32.mrb[0].mxu0
    %v263 = vadd.f32 0.0, %v262
    %v264 = vpop.f32.mrb[0].mxu0
    %265 = vmatprep.mubr.f32.mxu0 0.0
    %266 = vmatmul.mubr.f32.gmra.mrb[0].mxu0 %v157
    %v267 = vpop.f32.mrb[0].mxu0
    %v268 = vadd.f32 0.0, %v267
    %v269 = vpop.f32.mrb[0].mxu0
    %270 = vmatprep.mubr.f32.mxu0 0.0
    %271 = vmatmul.mubr.f32.gmra.mrb[0].mxu0 %v158
    %v272 = vpop.f32.mrb[0].mxu0
    %v273 = vadd.f32 0.0, %v272
    %v274 = vpop.f32.mrb[0].mxu0
    %275 = vmatprep.mubr.f32.mxu0 0.0
    %276 = vmatmul.mubr.f32.gmra.mrb[0].mxu0 %v159
    %v277 = vpop.f32.mrb[0].mxu0
    %v278 = vadd.f32 0.0, %v277
    %v279 = vpop.f32.mrb[0].mxu0
    %280 = vdwg.mxu0
    %v281 = vld [vmem:[#allocation4] sm:$0xff]
    %v282 = vld [vmem:[#allocation4 + $0x8] sm:$0xff]
    %v283 = vld [vmem:[#allocation4 + $0x10] sm:$0xff]
    %v284 = vld [vmem:[#allocation4 + $0x18] sm:$0xff]
    %v285 = vld [vmem:[#allocation4 + $0x20] sm:$0xff]
    %v286 = vld [vmem:[#allocation4 + $0x28] sm:$0xff]
    %v287 = vld [vmem:[#allocation4 + $0x30] sm:$0xff]
    %v288 = vld [vmem:[#allocation4 + $0x38] sm:$0xff]
    %v289 = vld [vmem:[#allocation4 + $0x40] sm:$0xff]
    %v290 = vld [vmem:[#allocation4 + $0x48] sm:$0xff]
    %v291 = vld [vmem:[#allocation4 + $0x50] sm:$0xff]
    %v292 = vld [vmem:[#allocation4 + $0x58] sm:$0xff]
    %v293 = vld [vmem:[#allocation4 + $0x60] sm:$0xff]
    %v294 = vld [vmem:[#allocation4 + $0x68] sm:$0xff]
    %v295 = vld [vmem:[#allocation4 + $0x70] sm:$0xff]
    %v296 = vld [vmem:[#allocation4 + $0x78] sm:$0xff]
    %v297 = vld [vmem:[%s4] sm:$0x1]
    %v299 = vlaneseq
    %v300 = vshrl.u32 %v299, 7
    %v301 = vsub.s32 0, %v300
    %v302 = vrot.slane %v297, %v301
    %304 = vmatprep.subr.mxu0 0.0
    %305 = vmatpush1.msra.mxu0 %v281
    %306 = vmatprep.subr.mxu0 0.0
    %307 = vmatpush1.msra.mxu0 %v282
    %308 = vmatprep.subr.mxu0 0.0
    %309 = vmatpush1.msra.mxu0 %v283
    %310 = vmatprep.subr.mxu0 0.0
    %311 = vmatpush1.msra.mxu0 %v284
    %312 = vmatprep.subr.mxu0 0.0
    %313 = vmatpush1.msra.mxu0 %v285
    %314 = vmatprep.subr.mxu0 0.0
    %315 = vmatpush1.msra.mxu0 %v286
    %316 = vmatprep.subr.mxu0 0.0
    %317 = vmatpush1.msra.mxu0 %v287
    %318 = vmatprep.subr.mxu0 0.0
    %319 = vmatpush1.msra.mxu0 %v288
    %320 = vmatprep.subr.mxu0 0.0
    %321 = vmatpush1.msra.mxu0 %v289
    %322 = vmatprep.subr.mxu0 0.0
    %323 = vmatpush1.msra.mxu0 %v290
    %324 = vmatprep.subr.mxu0 0.0
    %325 = vmatpush1.msra.mxu0 %v291
    %326 = vmatprep.subr.mxu0 0.0
    %327 = vmatpush1.msra.mxu0 %v292
    %328 = vmatprep.subr.mxu0 0.0
    %329 = vmatpush1.msra.mxu0 %v293
    %330 = vmatprep.subr.mxu0 0.0
    %331 = vmatpush1.msra.mxu0 %v294
    %332 = vmatprep.subr.mxu0 0.0
    %333 = vmatpush1.msra.mxu0 %v295
    %334 = vmatprep.subr.mxu0 0.0
    %335 = vmatpush1.msra.mxu0 %v296
    %336 = vmatprep.subr.mxu0 0.0
    %337 = vmatpush1.msra.mxu0 0.0
    %338 = vmatprep.subr.mxu0 0.0
    %339 = vmatpush1.msra.mxu0 0.0
    %340 = vmatprep.subr.mxu0 0.0
    %341 = vmatpush1.msra.mxu0 0.0
    %342 = vmatprep.subr.mxu0 0.0
    %343 = vmatpush1.msra.mxu0 0.0
    %344 = vmatprep.subr.mxu0 0.0
    %345 = vmatpush1.msra.mxu0 0.0
    %346 = vmatprep.subr.mxu0 0.0
    %347 = vmatpush1.msra.mxu0 0.0
    %348 = vmatprep.subr.mxu0 0.0
    %349 = vmatpush1.msra.mxu0 0.0
    %350 = vmatprep.subr.mxu0 0.0
    %351 = vmatpush1.msra.mxu0 0.0
    %352 = vmatprep.subr.mxu0 0.0
    %353 = vmatpush1.msra.mxu0 0.0
    %354 = vmatprep.subr.mxu0 0.0
    %355 = vmatpush1.msra.mxu0 0.0
    %356 = vmatprep.subr.mxu0 0.0
    %357 = vmatpush1.msra.mxu0 0.0
    %358 = vmatprep.subr.mxu0 0.0
    %359 = vmatpush1.msra.mxu0 0.0
    %360 = vmatprep.subr.mxu0 0.0
    %361 = vmatpush1.msra.mxu0 0.0
    %362 = vmatprep.subr.mxu0 0.0
    %363 = vmatpush1.msra.mxu0 0.0
    %364 = vmatprep.subr.mxu0 0.0
    %365 = vmatpush1.msra.mxu0 0.0
    %366 = vmatprep.subr.mxu0 0.0
    %367 = vmatpush1.msra.mxu0 0.0
    %368 = vmatprep.mubr.f32.mxu0 0.0
    %369 = vmatmul.mubr.f32.gmra.mrb[0].mxu0 %v243
    %v370 = vpop.f32.mrb[0].mxu0
    %v371 = vadd.f32 %v302, %v370
    %v372 = vpop.f32.mrb[0].mxu0
    %373 = vmatprep.mubr.f32.mxu0 0.0
    %374 = vmatmul.mubr.f32.gmra.mrb[0].mxu0 %v248
    %v375 = vpop.f32.mrb[0].mxu0
    %v376 = vadd.f32 %v302, %v375
    %v377 = vpop.f32.mrb[0].mxu0
    %378 = vmatprep.mubr.f32.mxu0 0.0
    %379 = vmatmul.mubr.f32.gmra.mrb[0].mxu0 %v253
    %v380 = vpop.f32.mrb[0].mxu0
    %v381 = vadd.f32 %v302, %v380
    %v382 = vpop.f32.mrb[0].mxu0
    %383 = vmatprep.mubr.f32.mxu0 0.0
    %384 = vmatmul.mubr.f32.gmra.mrb[0].mxu0 %v258
    %v385 = vpop.f32.mrb[0].mxu0
    %v386 = vadd.f32 %v302, %v385
    %v387 = vpop.f32.mrb[0].mxu0
    %388 = vmatprep.mubr.f32.mxu0 0.0
    %389 = vmatmul.mubr.f32.gmra.mrb[0].mxu0 %v263
    %v390 = vpop.f32.mrb[0].mxu0
    %v391 = vadd.f32 %v302, %v390
    %v392 = vpop.f32.mrb[0].mxu0
    %393 = vmatprep.mubr.f32.mxu0 0.0
    %394 = vmatmul.mubr.f32.gmra.mrb[0].mxu0 %v268
    %v395 = vpop.f32.mrb[0].mxu0
    %v396 = vadd.f32 %v302, %v395
    %v397 = vpop.f32.mrb[0].mxu0
    %398 = vmatprep.mubr.f32.mxu0 0.0
    %399 = vmatmul.mubr.f32.gmra.mrb[0].mxu0 %v273
    %v400 = vpop.f32.mrb[0].mxu0
    %v401 = vadd.f32 %v302, %v400
    %v402 = vpop.f32.mrb[0].mxu0
    %403 = vmatprep.mubr.f32.mxu0 0.0
    %404 = vmatmul.mubr.f32.gmra.mrb[0].mxu0 %v278
    %v405 = vpop.f32.mrb[0].mxu0
    %v406 = vadd.f32 %v302, %v405
    %v407 = vpop.f32.mrb[0].mxu0
    %408 = vdwg.mxu0
    %v409 = vld [vmem:[#allocation6] sm:$0xff]
    %v410 = vld [vmem:[#allocation6 + $0x8] sm:$0xff]
    %v411 = vld [vmem:[#allocation6 + $0x10] sm:$0xff]
    %v412 = vld [vmem:[#allocation6 + $0x18] sm:$0xff]
    %v413 = vld [vmem:[#allocation6 + $0x20] sm:$0xff]
    %v414 = vld [vmem:[#allocation6 + $0x28] sm:$0xff]
    %v415 = vld [vmem:[#allocation6 + $0x30] sm:$0xff]
    %v416 = vld [vmem:[#allocation6 + $0x38] sm:$0xff]
    %v417 = vld [vmem:[#allocation6 + $0x40] sm:$0xff]
    %v418 = vld [vmem:[#allocation6 + $0x48] sm:$0xff]
    %v419 = vld [vmem:[#allocation6 + $0x50] sm:$0xff]
    %v420 = vld [vmem:[#allocation6 + $0x58] sm:$0xff]
    %v421 = vld [vmem:[#allocation6 + $0x60] sm:$0xff]
    %v422 = vld [vmem:[#allocation6 + $0x68] sm:$0xff]
    %v423 = vld [vmem:[#allocation6 + $0x70] sm:$0xff]
    %v424 = vld [vmem:[#allocation6 + $0x78] sm:$0xff]
    %425 = vmatprep.subr.mxu0 0.0
    %426 = vmatpush1.msra.mxu0 %v409
    %427 = vmatprep.subr.mxu0 0.0
    %428 = vmatpush1.msra.mxu0 %v410
    %429 = vmatprep.subr.mxu0 0.0
    %430 = vmatpush1.msra.mxu0 %v411
    %431 = vmatprep.subr.mxu0 0.0
    %432 = vmatpush1.msra.mxu0 %v412
    %433 = vmatprep.subr.mxu0 0.0
    %434 = vmatpush1.msra.mxu0 %v413
    %435 = vmatprep.subr.mxu0 0.0
    %436 = vmatpush1.msra.mxu0 %v414
    %437 = vmatprep.subr.mxu0 0.0
    %438 = vmatpush1.msra.mxu0 %v415
    %439 = vmatprep.subr.mxu0 0.0
    %440 = vmatpush1.msra.mxu0 %v416
    %441 = vmatprep.subr.mxu0 0.0
    %442 = vmatpush1.msra.mxu0 %v417
    %443 = vmatprep.subr.mxu0 0.0
    %444 = vmatpush1.msra.mxu0 %v418
    %445 = vmatprep.subr.mxu0 0.0
    %446 = vmatpush1.msra.mxu0 %v419
    %447 = vmatprep.subr.mxu0 0.0
    %448 = vmatpush1.msra.mxu0 %v420
    %449 = vmatprep.subr.mxu0 0.0
    %450 = vmatpush1.msra.mxu0 %v421
    %451 = vmatprep.subr.mxu0 0.0
    %452 = vmatpush1.msra.mxu0 %v422
    %453 = vmatprep.subr.mxu0 0.0
    %454 = vmatpush1.msra.mxu0 %v423
    %455 = vmatprep.subr.mxu0 0.0
    %456 = vmatpush1.msra.mxu0 %v424
    %457 = vmatprep.subr.mxu0 0.0
    %458 = vmatpush1.msra.mxu0 0.0
    %459 = vmatprep.subr.mxu0 0.0
    %460 = vmatpush1.msra.mxu0 0.0
    %461 = vmatprep.subr.mxu0 0.0
    %462 = vmatpush1.msra.mxu0 0.0
    %463 = vmatprep.subr.mxu0 0.0
    %464 = vmatpush1.msra.mxu0 0.0
    %465 = vmatprep.subr.mxu0 0.0
    %466 = vmatpush1.msra.mxu0 0.0
    %467 = vmatprep.subr.mxu0 0.0
    %468 = vmatpush1.msra.mxu0 0.0
    %469 = vmatprep.subr.mxu0 0.0
    %470 = vmatpush1.msra.mxu0 0.0
    %471 = vmatprep.subr.mxu0 0.0
    %472 = vmatpush1.msra.mxu0 0.0
    %473 = vmatprep.subr.mxu0 0.0
    %474 = vmatpush1.msra.mxu0 0.0
    %475 = vmatprep.subr.mxu0 0.0
    %476 = vmatpush1.msra.mxu0 0.0
    %477 = vmatprep.subr.mxu0 0.0
    %478 = vmatpush1.msra.mxu0 0.0
    %479 = vmatprep.subr.mxu0 0.0
    %480 = vmatpush1.msra.mxu0 0.0
    %481 = vmatprep.subr.mxu0 0.0
    %482 = vmatpush1.msra.mxu0 0.0
    %483 = vmatprep.subr.mxu0 0.0
    %484 = vmatpush1.msra.mxu0 0.0
    %485 = vmatprep.subr.mxu0 0.0
    %486 = vmatpush1.msra.mxu0 0.0
    %487 = vmatprep.subr.mxu0 0.0
    %488 = vmatpush1.msra.mxu0 0.0
    %489 = vmatprep.mubr.f32.mxu0 0.0
    %490 = vmatmul.mubr.f32.gmra.mrb[0].mxu0 0.0
    %v491 = vpop.f32.mrb[0].mxu0
    %v492 = vadd.f32 0.0, %v491
    %v493 = vpop.f32.mrb[0].mxu0
    %494 = vdwg.mxu0
    %v495 = vadd.f32 %v371, %v492
    %v496 = vtanh.pop %v495
    %497 = vmatprep.subr.mxu0 0.0
    %498 = vmatpush1.msra.mxu0 %v409
    %499 = vmatprep.subr.mxu0 0.0
    %500 = vmatpush1.msra.mxu0 %v410
    %501 = vmatprep.subr.mxu0 0.0
    %502 = vmatpush1.msra.mxu0 %v411
    %503 = vmatprep.subr.mxu0 0.0
    %504 = vmatpush1.msra.mxu0 %v412
    %505 = vmatprep.subr.mxu0 0.0
    %506 = vmatpush1.msra.mxu0 %v413
    %507 = vmatprep.subr.mxu0 0.0
    %508 = vmatpush1.msra.mxu0 %v414
    %509 = vmatprep.subr.mxu0 0.0
    %510 = vmatpush1.msra.mxu0 %v415
    %511 = vmatprep.subr.mxu0 0.0
    %512 = vmatpush1.msra.mxu0 %v416
    %513 = vmatprep.subr.mxu0 0.0
    %514 = vmatpush1.msra.mxu0 %v417
    %515 = vmatprep.subr.mxu0 0.0
    %516 = vmatpush1.msra.mxu0 %v418
    %517 = vmatprep.subr.mxu0 0.0
    %518 = vmatpush1.msra.mxu0 %v419
    %519 = vmatprep.subr.mxu0 0.0
    %520 = vmatpush1.msra.mxu0 %v420
    %521 = vmatprep.subr.mxu0 0.0
    %522 = vmatpush1.msra.mxu0 %v421
    %523 = vmatprep.subr.mxu0 0.0
    %524 = vmatpush1.msra.mxu0 %v422
    %525 = vmatprep.subr.mxu0 0.0
    %526 = vmatpush1.msra.mxu0 %v423
    %527 = vmatprep.subr.mxu0 0.0
    %528 = vmatpush1.msra.mxu0 %v424
    %529 = vmatprep.subr.mxu0 0.0
    %530 = vmatpush1.msra.mxu0 0.0
    %531 = vmatprep.subr.mxu0 0.0
    %532 = vmatpush1.msra.mxu0 0.0
    %533 = vmatprep.subr.mxu0 0.0
    %534 = vmatpush1.msra.mxu0 0.0
    %535 = vmatprep.subr.mxu0 0.0
    %536 = vmatpush1.msra.mxu0 0.0
    %537 = vmatprep.subr.mxu0 0.0
    %538 = vmatpush1.msra.mxu0 0.0
    %539 = vmatprep.subr.mxu0 0.0
    %540 = vmatpush1.msra.mxu0 0.0
    %541 = vmatprep.subr.mxu0 0.0
    %542 = vmatpush1.msra.mxu0 0.0
    %543 = vmatprep.subr.mxu0 0.0
    %544 = vmatpush1.msra.mxu0 0.0
    %545 = vmatprep.subr.mxu0 0.0
    %546 = vmatpush1.msra.mxu0 0.0
    %547 = vmatprep.subr.mxu0 0.0
    %548 = vmatpush1.msra.mxu0 0.0
    %549 = vmatprep.subr.mxu0 0.0
    %550 = vmatpush1.msra.mxu0 0.0
    %551 = vmatprep.subr.mxu0 0.0
    %552 = vmatpush1.msra.mxu0 0.0
    %553 = vmatprep.subr.mxu0 0.0
    %554 = vmatpush1.msra.mxu0 0.0
    %555 = vmatprep.subr.mxu0 0.0
    %556 = vmatpush1.msra.mxu0 0.0
    %557 = vmatprep.subr.mxu0 0.0
    %558 = vmatpush1.msra.mxu0 0.0
    %559 = vmatprep.subr.mxu0 0.0
    %560 = vmatpush1.msra.mxu0 0.0
    %561 = vmatprep.mubr.f32.mxu0 0.0
    %562 = vmatmul.mubr.f32.gmra.mrb[0].mxu0 %v496
    %v563 = vpop.f32.mrb[0].mxu0
    %v564 = vadd.f32 0.0, %v563
    %v565 = vpop.f32.mrb[0].mxu0
    %566 = vdwg.mxu0
    %v567 = vadd.f32 %v376, %v564
    %v568 = vtanh.pop %v567
    %569 = vmatprep.subr.mxu0 0.0
    %570 = vmatpush1.msra.mxu0 %v409
    %571 = vmatprep.subr.mxu0 0.0
    %572 = vmatpush1.msra.mxu0 %v410
    %573 = vmatprep.subr.mxu0 0.0
    %574 = vmatpush1.msra.mxu0 %v411
    %575 = vmatprep.subr.mxu0 0.0
    %576 = vmatpush1.msra.mxu0 %v412
    %577 = vmatprep.subr.mxu0 0.0
    %578 = vmatpush1.msra.mxu0 %v413
    %579 = vmatprep.subr.mxu0 0.0
    %580 = vmatpush1.msra.mxu0 %v414
    %581 = vmatprep.subr.mxu0 0.0
    %582 = vmatpush1.msra.mxu0 %v415
    %583 = vmatprep.subr.mxu0 0.0
    %584 = vmatpush1.msra.mxu0 %v416
    %585 = vmatprep.subr.mxu0 0.0
    %586 = vmatpush1.msra.mxu0 %v417
    %587 = vmatprep.subr.mxu0 0.0
    %588 = vmatpush1.msra.mxu0 %v418
    %589 = vmatprep.subr.mxu0 0.0
    %590 = vmatpush1.msra.mxu0 %v419
    %591 = vmatprep.subr.mxu0 0.0
    %592 = vmatpush1.msra.mxu0 %v420
    %593 = vmatprep.subr.mxu0 0.0
    %594 = vmatpush1.msra.mxu0 %v421
    %595 = vmatprep.subr.mxu0 0.0
    %596 = vmatpush1.msra.mxu0 %v422
    %597 = vmatprep.subr.mxu0 0.0
    %598 = vmatpush1.msra.mxu0 %v423
    %599 = vmatprep.subr.mxu0 0.0
    %600 = vmatpush1.msra.mxu0 %v424
    %601 = vmatprep.subr.mxu0 0.0
    %602 = vmatpush1.msra.mxu0 0.0
    %603 = vmatprep.subr.mxu0 0.0
    %604 = vmatpush1.msra.mxu0 0.0
    %605 = vmatprep.subr.mxu0 0.0
    %606 = vmatpush1.msra.mxu0 0.0
    %607 = vmatprep.subr.mxu0 0.0
    %608 = vmatpush1.msra.mxu0 0.0
    %609 = vmatprep.subr.mxu0 0.0
    %610 = vmatpush1.msra.mxu0 0.0
    %611 = vmatprep.subr.mxu0 0.0
    %612 = vmatpush1.msra.mxu0 0.0
    %613 = vmatprep.subr.mxu0 0.0
    %614 = vmatpush1.msra.mxu0 0.0
    %615 = vmatprep.subr.mxu0 0.0
    %616 = vmatpush1.msra.mxu0 0.0
    %617 = vmatprep.subr.mxu0 0.0
    %618 = vmatpush1.msra.mxu0 0.0
    %619 = vmatprep.subr.mxu0 0.0
    %620 = vmatpush1.msra.mxu0 0.0
    %621 = vmatprep.subr.mxu0 0.0
    %622 = vmatpush1.msra.mxu0 0.0
    %623 = vmatprep.subr.mxu0 0.0
    %624 = vmatpush1.msra.mxu0 0.0
    %625 = vmatprep.subr.mxu0 0.0
    %626 = vmatpush1.msra.mxu0 0.0
    %627 = vmatprep.subr.mxu0 0.0
    %628 = vmatpush1.msra.mxu0 0.0
    %629 = vmatprep.subr.mxu0 0.0
    %630 = vmatpush1.msra.mxu0 0.0
    %631 = vmatprep.subr.mxu0 0.0
    %632 = vmatpush1.msra.mxu0 0.0
    %633 = vmatprep.mubr.f32.mxu0 0.0
    %634 = vmatmul.mubr.f32.gmra.mrb[0].mxu0 %v568
    %v635 = vpop.f32.mrb[0].mxu0
    %v636 = vadd.f32 0.0, %v635
    %v637 = vpop.f32.mrb[0].mxu0
    %638 = vdwg.mxu0
    %v639 = vadd.f32 %v381, %v636
    %v640 = vtanh.pop %v639
    %641 = vmatprep.subr.mxu0 0.0
    %642 = vmatpush1.msra.mxu0 %v409
    %643 = vmatprep.subr.mxu0 0.0
    %644 = vmatpush1.msra.mxu0 %v410
    %645 = vmatprep.subr.mxu0 0.0
    %646 = vmatpush1.msra.mxu0 %v411
    %647 = vmatprep.subr.mxu0 0.0
    %648 = vmatpush1.msra.mxu0 %v412
    %649 = vmatprep.subr.mxu0 0.0
    %650 = vmatpush1.msra.mxu0 %v413
    %651 = vmatprep.subr.mxu0 0.0
    %652 = vmatpush1.msra.mxu0 %v414
    %653 = vmatprep.subr.mxu0 0.0
    %654 = vmatpush1.msra.mxu0 %v415
    %655 = vmatprep.subr.mxu0 0.0
    %656 = vmatpush1.msra.mxu0 %v416
    %657 = vmatprep.subr.mxu0 0.0
    %658 = vmatpush1.msra.mxu0 %v417
    %659 = vmatprep.subr.mxu0 0.0
    %660 = vmatpush1.msra.mxu0 %v418
    %661 = vmatprep.subr.mxu0 0.0
    %662 = vmatpush1.msra.mxu0 %v419
    %663 = vmatprep.subr.mxu0 0.0
    %664 = vmatpush1.msra.mxu0 %v420
    %665 = vmatprep.subr.mxu0 0.0
    %666 = vmatpush1.msra.mxu0 %v421
    %667 = vmatprep.subr.mxu0 0.0
    %668 = vmatpush1.msra.mxu0 %v422
    %669 = vmatprep.subr.mxu0 0.0
    %670 = vmatpush1.msra.mxu0 %v423
    %671 = vmatprep.subr.mxu0 0.0
    %672 = vmatpush1.msra.mxu0 %v424
    %673 = vmatprep.subr.mxu0 0.0
    %674 = vmatpush1.msra.mxu0 0.0
    %675 = vmatprep.subr.mxu0 0.0
    %676 = vmatpush1.msra.mxu0 0.0
    %677 = vmatprep.subr.mxu0 0.0
    %678 = vmatpush1.msra.mxu0 0.0
    %679 = vmatprep.subr.mxu0 0.0
    %680 = vmatpush1.msra.mxu0 0.0
    %681 = vmatprep.subr.mxu0 0.0
    %682 = vmatpush1.msra.mxu0 0.0
    %683 = vmatprep.subr.mxu0 0.0
    %684 = vmatpush1.msra.mxu0 0.0
    %685 = vmatprep.subr.mxu0 0.0
    %686 = vmatpush1.msra.mxu0 0.0
    %687 = vmatprep.subr.mxu0 0.0
    %688 = vmatpush1.msra.mxu0 0.0
    %689 = vmatprep.subr.mxu0 0.0
    %690 = vmatpush1.msra.mxu0 0.0
    %691 = vmatprep.subr.mxu0 0.0
    %692 = vmatpush1.msra.mxu0 0.0
    %693 = vmatprep.subr.mxu0 0.0
    %694 = vmatpush1.msra.mxu0 0.0
    %695 = vmatprep.subr.mxu0 0.0
    %696 = vmatpush1.msra.mxu0 0.0
    %697 = vmatprep.subr.mxu0 0.0
    %698 = vmatpush1.msra.mxu0 0.0
    %699 = vmatprep.subr.mxu0 0.0
    %700 = vmatpush1.msra.mxu0 0.0
    %701 = vmatprep.subr.mxu0 0.0
    %702 = vmatpush1.msra.mxu0 0.0
    %703 = vmatprep.subr.mxu0 0.0
    %704 = vmatpush1.msra.mxu0 0.0
    %705 = vmatprep.mubr.f32.mxu0 0.0
    %706 = vmatmul.mubr.f32.gmra.mrb[0].mxu0 %v640
    %v707 = vpop.f32.mrb[0].mxu0
    %v708 = vadd.f32 0.0, %v707
    %v709 = vpop.f32.mrb[0].mxu0
    %710 = vdwg.mxu0
    %v711 = vadd.f32 %v386, %v708
    %v712 = vtanh.pop %v711
    %713 = vmatprep.subr.mxu0 0.0
    %714 = vmatpush1.msra.mxu0 %v409
    %715 = vmatprep.subr.mxu0 0.0
    %716 = vmatpush1.msra.mxu0 %v410
    %717 = vmatprep.subr.mxu0 0.0
    %718 = vmatpush1.msra.mxu0 %v411
    %719 = vmatprep.subr.mxu0 0.0
    %720 = vmatpush1.msra.mxu0 %v412
    %721 = vmatprep.subr.mxu0 0.0
    %722 = vmatpush1.msra.mxu0 %v413
    %723 = vmatprep.subr.mxu0 0.0
    %724 = vmatpush1.msra.mxu0 %v414
    %725 = vmatprep.subr.mxu0 0.0
    %726 = vmatpush1.msra.mxu0 %v415
    %727 = vmatprep.subr.mxu0 0.0
    %728 = vmatpush1.msra.mxu0 %v416
    %729 = vmatprep.subr.mxu0 0.0
    %730 = vmatpush1.msra.mxu0 %v417
    %731 = vmatprep.subr.mxu0 0.0
    %732 = vmatpush1.msra.mxu0 %v418
    %733 = vmatprep.subr.mxu0 0.0
    %734 = vmatpush1.msra.mxu0 %v419
    %735 = vmatprep.subr.mxu0 0.0
    %736 = vmatpush1.msra.mxu0 %v420
    %737 = vmatprep.subr.mxu0 0.0
    %738 = vmatpush1.msra.mxu0 %v421
    %739 = vmatprep.subr.mxu0 0.0
    %740 = vmatpush1.msra.mxu0 %v422
    %741 = vmatprep.subr.mxu0 0.0
    %742 = vmatpush1.msra.mxu0 %v423
    %743 = vmatprep.subr.mxu0 0.0
    %744 = vmatpush1.msra.mxu0 %v424
    %745 = vmatprep.subr.mxu0 0.0
    %746 = vmatpush1.msra.mxu0 0.0
    %747 = vmatprep.subr.mxu0 0.0
    %748 = vmatpush1.msra.mxu0 0.0
    %749 = vmatprep.subr.mxu0 0.0
    %750 = vmatpush1.msra.mxu0 0.0
    %751 = vmatprep.subr.mxu0 0.0
    %752 = vmatpush1.msra.mxu0 0.0
    %753 = vmatprep.subr.mxu0 0.0
    %754 = vmatpush1.msra.mxu0 0.0
    %755 = vmatprep.subr.mxu0 0.0
    %756 = vmatpush1.msra.mxu0 0.0
    %757 = vmatprep.subr.mxu0 0.0
    %758 = vmatpush1.msra.mxu0 0.0
    %759 = vmatprep.subr.mxu0 0.0
    %760 = vmatpush1.msra.mxu0 0.0
    %761 = vmatprep.subr.mxu0 0.0
    %762 = vmatpush1.msra.mxu0 0.0
    %763 = vmatprep.subr.mxu0 0.0
    %764 = vmatpush1.msra.mxu0 0.0
    %765 = vmatprep.subr.mxu0 0.0
    %766 = vmatpush1.msra.mxu0 0.0
    %767 = vmatprep.subr.mxu0 0.0
    %768 = vmatpush1.msra.mxu0 0.0
    %769 = vmatprep.subr.mxu0 0.0
    %770 = vmatpush1.msra.mxu0 0.0
    %771 = vmatprep.subr.mxu0 0.0
    %772 = vmatpush1.msra.mxu0 0.0
    %773 = vmatprep.subr.mxu0 0.0
    %774 = vmatpush1.msra.mxu0 0.0
    %775 = vmatprep.subr.mxu0 0.0
    %776 = vmatpush1.msra.mxu0 0.0
    %777 = vmatprep.mubr.f32.mxu0 0.0
    %778 = vmatmul.mubr.f32.gmra.mrb[0].mxu0 %v712
    %v779 = vpop.f32.mrb[0].mxu0
    %v780 = vadd.f32 0.0, %v779
    %v781 = vpop.f32.mrb[0].mxu0
    %782 = vdwg.mxu0
    %v783 = vadd.f32 %v391, %v780
    %v784 = vtanh.pop %v783
    %785 = vmatprep.subr.mxu0 0.0
    %786 = vmatpush1.msra.mxu0 %v409
    %787 = vmatprep.subr.mxu0 0.0
    %788 = vmatpush1.msra.mxu0 %v410
    %789 = vmatprep.subr.mxu0 0.0
    %790 = vmatpush1.msra.mxu0 %v411
    %791 = vmatprep.subr.mxu0 0.0
    %792 = vmatpush1.msra.mxu0 %v412
    %793 = vmatprep.subr.mxu0 0.0
    %794 = vmatpush1.msra.mxu0 %v413
    %795 = vmatprep.subr.mxu0 0.0
    %796 = vmatpush1.msra.mxu0 %v414
    %797 = vmatprep.subr.mxu0 0.0
    %798 = vmatpush1.msra.mxu0 %v415
    %799 = vmatprep.subr.mxu0 0.0
    %800 = vmatpush1.msra.mxu0 %v416
    %801 = vmatprep.subr.mxu0 0.0
    %802 = vmatpush1.msra.mxu0 %v417
    %803 = vmatprep.subr.mxu0 0.0
    %804 = vmatpush1.msra.mxu0 %v418
    %805 = vmatprep.subr.mxu0 0.0
    %806 = vmatpush1.msra.mxu0 %v419
    %807 = vmatprep.subr.mxu0 0.0
    %808 = vmatpush1.msra.mxu0 %v420
    %809 = vmatprep.subr.mxu0 0.0
    %810 = vmatpush1.msra.mxu0 %v421
    %811 = vmatprep.subr.mxu0 0.0
    %812 = vmatpush1.msra.mxu0 %v422
    %813 = vmatprep.subr.mxu0 0.0
    %814 = vmatpush1.msra.mxu0 %v423
    %815 = vmatprep.subr.mxu0 0.0
    %816 = vmatpush1.msra.mxu0 %v424
    %817 = vmatprep.subr.mxu0 0.0
    %818 = vmatpush1.msra.mxu0 0.0
    %819 = vmatprep.subr.mxu0 0.0
    %820 = vmatpush1.msra.mxu0 0.0
    %821 = vmatprep.subr.mxu0 0.0
    %822 = vmatpush1.msra.mxu0 0.0
    %823 = vmatprep.subr.mxu0 0.0
    %824 = vmatpush1.msra.mxu0 0.0
    %825 = vmatprep.subr.mxu0 0.0
    %826 = vmatpush1.msra.mxu0 0.0
    %827 = vmatprep.subr.mxu0 0.0
    %828 = vmatpush1.msra.mxu0 0.0
    %829 = vmatprep.subr.mxu0 0.0
    %830 = vmatpush1.msra.mxu0 0.0
    %831 = vmatprep.subr.mxu0 0.0
    %832 = vmatpush1.msra.mxu0 0.0
    %833 = vmatprep.subr.mxu0 0.0
    %834 = vmatpush1.msra.mxu0 0.0
    %835 = vmatprep.subr.mxu0 0.0
    %836 = vmatpush1.msra.mxu0 0.0
    %837 = vmatprep.subr.mxu0 0.0
    %838 = vmatpush1.msra.mxu0 0.0
    %839 = vmatprep.subr.mxu0 0.0
    %840 = vmatpush1.msra.mxu0 0.0
    %841 = vmatprep.subr.mxu0 0.0
    %842 = vmatpush1.msra.mxu0 0.0
    %843 = vmatprep.subr.mxu0 0.0
    %844 = vmatpush1.msra.mxu0 0.0
    %845 = vmatprep.subr.mxu0 0.0
    %846 = vmatpush1.msra.mxu0 0.0
    %847 = vmatprep.subr.mxu0 0.0
    %848 = vmatpush1.msra.mxu0 0.0
    %849 = vmatprep.mubr.f32.mxu0 0.0
    %850 = vmatmul.mubr.f32.gmra.mrb[0].mxu0 %v784
    %v851 = vpop.f32.mrb[0].mxu0
    %v852 = vadd.f32 0.0, %v851
    %v853 = vpop.f32.mrb[0].mxu0
    %854 = vdwg.mxu0
    %v855 = vadd.f32 %v396, %v852
    %v856 = vtanh.pop %v855
    %857 = vmatprep.subr.mxu0 0.0
    %858 = vmatpush1.msra.mxu0 %v409
    %859 = vmatprep.subr.mxu0 0.0
    %860 = vmatpush1.msra.mxu0 %v410
    %861 = vmatprep.subr.mxu0 0.0
    %862 = vmatpush1.msra.mxu0 %v411
    %863 = vmatprep.subr.mxu0 0.0
    %864 = vmatpush1.msra.mxu0 %v412
    %865 = vmatprep.subr.mxu0 0.0
    %866 = vmatpush1.msra.mxu0 %v413
    %867 = vmatprep.subr.mxu0 0.0
    %868 = vmatpush1.msra.mxu0 %v414
    %869 = vmatprep.subr.mxu0 0.0
    %870 = vmatpush1.msra.mxu0 %v415
    %871 = vmatprep.subr.mxu0 0.0
    %872 = vmatpush1.msra.mxu0 %v416
    %873 = vmatprep.subr.mxu0 0.0
    %874 = vmatpush1.msra.mxu0 %v417
    %875 = vmatprep.subr.mxu0 0.0
    %876 = vmatpush1.msra.mxu0 %v418
    %877 = vmatprep.subr.mxu0 0.0
    %878 = vmatpush1.msra.mxu0 %v419
    %879 = vmatprep.subr.mxu0 0.0
    %880 = vmatpush1.msra.mxu0 %v420
    %881 = vmatprep.subr.mxu0 0.0
    %882 = vmatpush1.msra.mxu0 %v421
    %883 = vmatprep.subr.mxu0 0.0
    %884 = vmatpush1.msra.mxu0 %v422
    %885 = vmatprep.subr.mxu0 0.0
    %886 = vmatpush1.msra.mxu0 %v423
    %887 = vmatprep.subr.mxu0 0.0
    %888 = vmatpush1.msra.mxu0 %v424
    %889 = vmatprep.subr.mxu0 0.0
    %890 = vmatpush1.msra.mxu0 0.0
    %891 = vmatprep.subr.mxu0 0.0
    %892 = vmatpush1.msra.mxu0 0.0
    %893 = vmatprep.subr.mxu0 0.0
    %894 = vmatpush1.msra.mxu0 0.0
    %895 = vmatprep.subr.mxu0 0.0
    %896 = vmatpush1.msra.mxu0 0.0
    %897 = vmatprep.subr.mxu0 0.0
    %898 = vmatpush1.msra.mxu0 0.0
    %899 = vmatprep.subr.mxu0 0.0
    %900 = vmatpush1.msra.mxu0 0.0
    %901 = vmatprep.subr.mxu0 0.0
    %902 = vmatpush1.msra.mxu0 0.0
    %903 = vmatprep.subr.mxu0 0.0
    %904 = vmatpush1.msra.mxu0 0.0
    %905 = vmatprep.subr.mxu0 0.0
    %906 = vmatpush1.msra.mxu0 0.0
    %907 = vmatprep.subr.mxu0 0.0
    %908 = vmatpush1.msra.mxu0 0.0
    %909 = vmatprep.subr.mxu0 0.0
    %910 = vmatpush1.msra.mxu0 0.0
    %911 = vmatprep.subr.mxu0 0.0
    %912 = vmatpush1.msra.mxu0 0.0
    %913 = vmatprep.subr.mxu0 0.0
    %914 = vmatpush1.msra.mxu0 0.0
    %915 = vmatprep.subr.mxu0 0.0
    %916 = vmatpush1.msra.mxu0 0.0
    %917 = vmatprep.subr.mxu0 0.0
    %918 = vmatpush1.msra.mxu0 0.0
    %919 = vmatprep.subr.mxu0 0.0
    %920 = vmatpush1.msra.mxu0 0.0
    %921 = vmatprep.mubr.f32.mxu0 0.0
    %922 = vmatmul.mubr.f32.gmra.mrb[0].mxu0 %v856
    %v923 = vpop.f32.mrb[0].mxu0
    %v924 = vadd.f32 0.0, %v923
    %v925 = vpop.f32.mrb[0].mxu0
    %926 = vdwg.mxu0
    %v927 = vadd.f32 %v401, %v924
    %v928 = vtanh.pop %v927
    %929 = vmatprep.subr.mxu0 0.0
    %930 = vmatpush1.msra.mxu0 %v409
    %931 = vmatprep.subr.mxu0 0.0
    %932 = vmatpush1.msra.mxu0 %v410
    %933 = vmatprep.subr.mxu0 0.0
    %934 = vmatpush1.msra.mxu0 %v411
    %935 = vmatprep.subr.mxu0 0.0
    %936 = vmatpush1.msra.mxu0 %v412
    %937 = vmatprep.subr.mxu0 0.0
    %938 = vmatpush1.msra.mxu0 %v413
    %939 = vmatprep.subr.mxu0 0.0
    %940 = vmatpush1.msra.mxu0 %v414
    %941 = vmatprep.subr.mxu0 0.0
    %942 = vmatpush1.msra.mxu0 %v415
    %943 = vmatprep.subr.mxu0 0.0
    %944 = vmatpush1.msra.mxu0 %v416
    %945 = vmatprep.subr.mxu0 0.0
    %946 = vmatpush1.msra.mxu0 %v417
    %947 = vmatprep.subr.mxu0 0.0
    %948 = vmatpush1.msra.mxu0 %v418
    %949 = vmatprep.subr.mxu0 0.0
    %950 = vmatpush1.msra.mxu0 %v419
    %951 = vmatprep.subr.mxu0 0.0
    %952 = vmatpush1.msra.mxu0 %v420
    %953 = vmatprep.subr.mxu0 0.0
    %954 = vmatpush1.msra.mxu0 %v421
    %955 = vmatprep.subr.mxu0 0.0
    %956 = vmatpush1.msra.mxu0 %v422
    %957 = vmatprep.subr.mxu0 0.0
    %958 = vmatpush1.msra.mxu0 %v423
    %959 = vmatprep.subr.mxu0 0.0
    %960 = vmatpush1.msra.mxu0 %v424
    %961 = vmatprep.subr.mxu0 0.0
    %962 = vmatpush1.msra.mxu0 0.0
    %963 = vmatprep.subr.mxu0 0.0
    %964 = vmatpush1.msra.mxu0 0.0
    %965 = vmatprep.subr.mxu0 0.0
    %966 = vmatpush1.msra.mxu0 0.0
    %967 = vmatprep.subr.mxu0 0.0
    %968 = vmatpush1.msra.mxu0 0.0
    %969 = vmatprep.subr.mxu0 0.0
    %970 = vmatpush1.msra.mxu0 0.0
    %971 = vmatprep.subr.mxu0 0.0
    %972 = vmatpush1.msra.mxu0 0.0
    %973 = vmatprep.subr.mxu0 0.0
    %974 = vmatpush1.msra.mxu0 0.0
    %975 = vmatprep.subr.mxu0 0.0
    %976 = vmatpush1.msra.mxu0 0.0
    %977 = vmatprep.subr.mxu0 0.0
    %978 = vmatpush1.msra.mxu0 0.0
    %979 = vmatprep.subr.mxu0 0.0
    %980 = vmatpush1.msra.mxu0 0.0
    %981 = vmatprep.subr.mxu0 0.0
    %982 = vmatpush1.msra.mxu0 0.0
    %983 = vmatprep.subr.mxu0 0.0
    %984 = vmatpush1.msra.mxu0 0.0
    %985 = vmatprep.subr.mxu0 0.0
    %986 = vmatpush1.msra.mxu0 0.0
    %987 = vmatprep.subr.mxu0 0.0
    %988 = vmatpush1.msra.mxu0 0.0
    %989 = vmatprep.subr.mxu0 0.0
    %990 = vmatpush1.msra.mxu0 0.0
    %991 = vmatprep.subr.mxu0 0.0
    %992 = vmatpush1.msra.mxu0 0.0
    %993 = vmatprep.mubr.f32.mxu0 0.0
    %994 = vmatmul.mubr.f32.gmra.mrb[0].mxu0 %v928
    %v995 = vpop.f32.mrb[0].mxu0
    %v996 = vadd.f32 0.0, %v995
    %v997 = vpop.f32.mrb[0].mxu0
    %998 = vdwg.mxu0
    %v999 = vadd.f32 %v406, %v996
    %v1000 = vtanh.pop %v999
    %1001 = vst [vmem:[%s9] sm:$0xff] %v496
    %1002 = vst [vmem:[%s9 + $0x8] sm:$0xff] %v568
    %1003 = vst [vmem:[%s9 + $0x10] sm:$0xff] %v640
    %1004 = vst [vmem:[%s9 + $0x18] sm:$0xff] %v712
    %1005 = vst [vmem:[%s9 + $0x20] sm:$0xff] %v784
    %1006 = vst [vmem:[%s9 + $0x28] sm:$0xff] %v856
    %1007 = vst [vmem:[%s9 + $0x30] sm:$0xff] %v928
    %1008 = vst [vmem:[%s9 + $0x38] sm:$0xff] %v1000
    %v1009 = vld [vmem:[#allocation7] sm:$0xff]
    %v1010 = vld [vmem:[#allocation7 + $0x8] sm:$0xff]
    %v1011 = vld [vmem:[#allocation7 + $0x10] sm:$0xff]
    %v1012 = vld [vmem:[#allocation7 + $0x18] sm:$0xff]
    %v1013 = vld [vmem:[#allocation7 + $0x20] sm:$0xff]
    %v1014 = vld [vmem:[#allocation7 + $0x28] sm:$0xff]
    %v1015 = vld [vmem:[#allocation7 + $0x30] sm:$0xff]
    %v1016 = vld [vmem:[#allocation7 + $0x38] sm:$0xff]
    %v1017 = vld [vmem:[#allocation7 + $0x40] sm:$0xff]
    %v1018 = vld [vmem:[#allocation7 + $0x48] sm:$0xff]
    %v1019 = vld [vmem:[#allocation7 + $0x50] sm:$0xff]
    %v1020 = vld [vmem:[#allocation7 + $0x58] sm:$0xff]
    %v1021 = vld [vmem:[#allocation7 + $0x60] sm:$0xff]
    %v1022 = vld [vmem:[#allocation7 + $0x68] sm:$0xff]
    %v1023 = vld [vmem:[#allocation7 + $0x70] sm:$0xff]
    %v1024 = vld [vmem:[#allocation7 + $0x78] sm:$0xff]
    %v1025 = vld [vmem:[%s6] sm:$0x1]
    %v1027 = vlaneseq
    %v1028 = vshrl.u32 %v1027, 7
    %v1029 = vsub.s32 0, %v1028
    %v1030 = vrot.slane %v1025, %v1029
    %1032 = vmatprep.subr.mxu0 0.0
    %1033 = vmatpush1.msra.mxu0 %v1009
    %1034 = vmatprep.subr.mxu0 0.0
    %1035 = vmatpush1.msra.mxu0 %v1010
    %1036 = vmatprep.subr.mxu0 0.0
    %1037 = vmatpush1.msra.mxu0 %v1011
    %1038 = vmatprep.subr.mxu0 0.0
    %1039 = vmatpush1.msra.mxu0 %v1012
    %1040 = vmatprep.subr.mxu0 0.0
    %1041 = vmatpush1.msra.mxu0 %v1013
    %1042 = vmatprep.subr.mxu0 0.0
    %1043 = vmatpush1.msra.mxu0 %v1014
    %1044 = vmatprep.subr.mxu0 0.0
    %1045 = vmatpush1.msra.mxu0 %v1015
    %1046 = vmatprep.subr.mxu0 0.0
    %1047 = vmatpush1.msra.mxu0 %v1016
    %1048 = vmatprep.subr.mxu0 0.0
    %1049 = vmatpush1.msra.mxu0 %v1017
    %1050 = vmatprep.subr.mxu0 0.0
    %1051 = vmatpush1.msra.mxu0 %v1018
    %1052 = vmatprep.subr.mxu0 0.0
    %1053 = vmatpush1.msra.mxu0 %v1019
    %1054 = vmatprep.subr.mxu0 0.0
    %1055 = vmatpush1.msra.mxu0 %v1020
    %1056 = vmatprep.subr.mxu0 0.0
    %1057 = vmatpush1.msra.mxu0 %v1021
    %1058 = vmatprep.subr.mxu0 0.0
    %1059 = vmatpush1.msra.mxu0 %v1022
    %1060 = vmatprep.subr.mxu0 0.0
    %1061 = vmatpush1.msra.mxu0 %v1023
    %1062 = vmatprep.subr.mxu0 0.0
    %1063 = vmatpush1.msra.mxu0 %v1024
    %1064 = vmatprep.subr.mxu0 0.0
    %1065 = vmatpush1.msra.mxu0 0.0
    %1066 = vmatprep.subr.mxu0 0.0
    %1067 = vmatpush1.msra.mxu0 0.0
    %1068 = vmatprep.subr.mxu0 0.0
    %1069 = vmatpush1.msra.mxu0 0.0
    %1070 = vmatprep.subr.mxu0 0.0
    %1071 = vmatpush1.msra.mxu0 0.0
    %1072 = vmatprep.subr.mxu0 0.0
    %1073 = vmatpush1.msra.mxu0 0.0
    %1074 = vmatprep.subr.mxu0 0.0
    %1075 = vmatpush1.msra.mxu0 0.0
    %1076 = vmatprep.subr.mxu0 0.0
    %1077 = vmatpush1.msra.mxu0 0.0
    %1078 = vmatprep.subr.mxu0 0.0
    %1079 = vmatpush1.msra.mxu0 0.0
    %1080 = vmatprep.subr.mxu0 0.0
    %1081 = vmatpush1.msra.mxu0 0.0
    %1082 = vmatprep.subr.mxu0 0.0
    %1083 = vmatpush1.msra.mxu0 0.0
    %1084 = vmatprep.subr.mxu0 0.0
    %1085 = vmatpush1.msra.mxu0 0.0
    %1086 = vmatprep.subr.mxu0 0.0
    %1087 = vmatpush1.msra.mxu0 0.0
    %1088 = vmatprep.subr.mxu0 0.0
    %1089 = vmatpush1.msra.mxu0 0.0
    %1090 = vmatprep.subr.mxu0 0.0
    %1091 = vmatpush1.msra.mxu0 0.0
    %1092 = vmatprep.subr.mxu0 0.0
    %1093 = vmatpush1.msra.mxu0 0.0
    %1094 = vmatprep.subr.mxu0 0.0
    %1095 = vmatpush1.msra.mxu0 0.0
    %1096 = vmatprep.mubr.f32.mxu0 0.0
    %1097 = vmatmul.mubr.f32.gmra.mrb[0].mxu0 %v1000
    %v1098 = vpop.f32.mrb[0].mxu0
    %v1099 = vadd.f32 %v1030, %v1098
    %v1100 = vpop.f32.mrb[0].mxu0
    %1101 = vdwg.mxu0
    %v1102 = vmax.f32 %v1099, 0.0
    %v1103 = vld [vmem:[#allocation9] sm:$0xff]
    %v1104 = vld [vmem:[#allocation9 + $0x8] sm:$0xff]
    %v1105 = vld [vmem:[#allocation9 + $0x10] sm:$0xff]
    %v1106 = vld [vmem:[#allocation9 + $0x18] sm:$0xff]
    %v1107 = vld [vmem:[#allocation9 + $0x20] sm:$0xff]
    %v1108 = vld [vmem:[#allocation9 + $0x28] sm:$0xff]
    %v1109 = vld [vmem:[#allocation9 + $0x30] sm:$0xff]
    %v1110 = vld [vmem:[#allocation9 + $0x38] sm:$0xff]
    %v1111 = vld [vmem:[#allocation9 + $0x40] sm:$0xff]
    %v1112 = vld [vmem:[#allocation9 + $0x48] sm:$0xff]
    %v1113 = vld [vmem:[#allocation9 + $0x50] sm:$0xff]
    %v1114 = vld [vmem:[#allocation9 + $0x58] sm:$0xff]
    %v1115 = vld [vmem:[#allocation9 + $0x60] sm:$0xff]
    %v1116 = vld [vmem:[#allocation9 + $0x68] sm:$0xff]
    %v1117 = vld [vmem:[#allocation9 + $0x70] sm:$0xff]
    %v1118 = vld [vmem:[#allocation9 + $0x78] sm:$0xff]
    %v1119 = vld [vmem:[%s8] sm:$0x1]
    %v1121 = vlaneseq
    %v1122 = vshrl.u32 %v1121, 7
    %v1123 = vsub.s32 0, %v1122
    %v1124 = vrot.slane %v1119, %v1123
    %1126 = vmatprep.subr.mxu0 0.0
    %1127 = vmatpush1.msra.mxu0 %v1103
    %1128 = vmatprep.subr.mxu0 0.0
    %1129 = vmatpush1.msra.mxu0 %v1104
    %1130 = vmatprep.subr.mxu0 0.0
    %1131 = vmatpush1.msra.mxu0 %v1105
    %1132 = vmatprep.subr.mxu0 0.0
    %1133 = vmatpush1.msra.mxu0 %v1106
    %1134 = vmatprep.subr.mxu0 0.0
    %1135 = vmatpush1.msra.mxu0 %v1107
    %1136 = vmatprep.subr.mxu0 0.0
    %1137 = vmatpush1.msra.mxu0 %v1108
    %1138 = vmatprep.subr.mxu0 0.0
    %1139 = vmatpush1.msra.mxu0 %v1109
    %1140 = vmatprep.subr.mxu0 0.0
    %1141 = vmatpush1.msra.mxu0 %v1110
    %1142 = vmatprep.subr.mxu0 0.0
    %1143 = vmatpush1.msra.mxu0 %v1111
    %1144 = vmatprep.subr.mxu0 0.0
    %1145 = vmatpush1.msra.mxu0 %v1112
    %1146 = vmatprep.subr.mxu0 0.0
    %1147 = vmatpush1.msra.mxu0 %v1113
    %1148 = vmatprep.subr.mxu0 0.0
    %1149 = vmatpush1.msra.mxu0 %v1114
    %1150 = vmatprep.subr.mxu0 0.0
    %1151 = vmatpush1.msra.mxu0 %v1115
    %1152 = vmatprep.subr.mxu0 0.0
    %1153 = vmatpush1.msra.mxu0 %v1116
    %1154 = vmatprep.subr.mxu0 0.0
    %1155 = vmatpush1.msra.mxu0 %v1117
    %1156 = vmatprep.subr.mxu0 0.0
    %1157 = vmatpush1.msra.mxu0 %v1118
    %1158 = vmatprep.subr.mxu0 0.0
    %1159 = vmatpush1.msra.mxu0 0.0
    %1160 = vmatprep.subr.mxu0 0.0
    %1161 = vmatpush1.msra.mxu0 0.0
    %1162 = vmatprep.subr.mxu0 0.0
    %1163 = vmatpush1.msra.mxu0 0.0
    %1164 = vmatprep.subr.mxu0 0.0
    %1165 = vmatpush1.msra.mxu0 0.0
    %1166 = vmatprep.subr.mxu0 0.0
    %1167 = vmatpush1.msra.mxu0 0.0
    %1168 = vmatprep.subr.mxu0 0.0
    %1169 = vmatpush1.msra.mxu0 0.0
    %1170 = vmatprep.subr.mxu0 0.0
    %1171 = vmatpush1.msra.mxu0 0.0
    %1172 = vmatprep.subr.mxu0 0.0
    %1173 = vmatpush1.msra.mxu0 0.0
    %1174 = vmatprep.subr.mxu0 0.0
    %1175 = vmatpush1.msra.mxu0 0.0
    %1176 = vmatprep.subr.mxu0 0.0
    %1177 = vmatpush1.msra.mxu0 0.0
    %1178 = vmatprep.subr.mxu0 0.0
    %1179 = vmatpush1.msra.mxu0 0.0
    %1180 = vmatprep.subr.mxu0 0.0
    %1181 = vmatpush1.msra.mxu0 0.0
    %1182 = vmatprep.subr.mxu0 0.0
    %1183 = vmatpush1.msra.mxu0 0.0
    %1184 = vmatprep.subr.mxu0 0.0
    %1185 = vmatpush1.msra.mxu0 0.0
    %1186 = vmatprep.subr.mxu0 0.0
    %1187 = vmatpush1.msra.mxu0 0.0
    %1188 = vmatprep.subr.mxu0 0.0
    %1189 = vmatpush1.msra.mxu0 0.0
    %1190 = vmatprep.mubr.f32.mxu0 0.0
    %1191 = vmatmul.mubr.f32.gmra.mrb[0].mxu0 %v1102
    %v1192 = vpop.f32.mrb[0].mxu0
    %v1193 = vadd.f32 %v1124, %v1192
    %v1194 = vpop.f32.mrb[0].mxu0
    %1195 = vdwg.mxu0
    %v1196 = vtanh.pop %v1193
    %1197 = vst [vmem:[%s10] sm:$0xff] %v1196
    // Predicated region
    $region58: #{encoder_forward.1} parent=1 // pred_check
      _
    $region59: #{encoder_forward.1} parent=1 // pred_check_branch
      %1199 = sbr.rel (0) target = $region61
    $region60: #{encoder_forward.1} parent=1 // pred_region
      _
    $region61: #{encoder_forward.1} parent=1 // pred_fallthru
      _
    // Predicated region
    $region62: #{encoder_forward.1} parent=1 // pred_check
      _
    $region63: #{encoder_forward.1} parent=1 // pred_check_branch
      %1201 = sbr.rel (0) target = $region65
    $region64: #{encoder_forward.1} parent=1 // pred_region
      _
    $region65: #{encoder_forward.1} parent=1 // pred_fallthru
      _
    // Predicated region
    $region66: #{encoder_forward.1} parent=1 // pred_check
      _
    $region67: #{encoder_forward.1} parent=1 // pred_check_branch
      %1203 = sbr.rel (0) target = $region69
    $region68: #{encoder_forward.1} parent=1 // pred_region
      _
    $region69: #{encoder_forward.1} parent=1 // pred_fallthru
      _
    // Predicated region
    $region70: #{encoder_forward.1} parent=1 // pred_check
      _
    $region71: #{encoder_forward.1} parent=1 // pred_check_branch
      %1205 = sbr.rel (0) target = $region73
    $region72: #{encoder_forward.1} parent=1 // pred_region
      _
    $region73: #{encoder_forward.1} parent=1 // pred_fallthru
      _
    %1206 = vsyncpa [#allocation3], 1
    %1207 = vsyncpa [#allocation5], 1
    %1208 = vsyncpa [#allocation8], 1

</llo_original>
